<compile_context>
chip_gen: v5e
topology: v5e:2x2
jax: 0.10.0
libtpu: 0.0.40
codegen_flags: <defaults>
</compile_context>

<pallas_src>
import math

import jax
import jax.numpy as jnp
from jax.experimental import pallas as pl
from jax.experimental.pallas import tpu as pltpu

# ----------------------------- configuration -----------------------------
B = 2          # batch
S = 8          # sequence length
H = 32         # hidden size (module's input_dim, small for the demo)
F = 4 * H      # FFN intermediate size (= 128)
VOCAB = 64
OUT_DIM = 1
LN_EPS = 1e-5
BS = B * S     # flattened token count

# bias-pack row layout (each row is 128 lanes, payload starts at lane 0)
_BQ, _BK, _BV, _BO, _L1G, _L1B, _B1, _B2, _L2G, _L2B, _BH = range(11)
_BIAS_ROWS = 16  # padded to a clean sublane multiple


def _layernorm(x, g, b):
    mu = jnp.mean(x, axis=-1, keepdims=True)
    var = jnp.mean((x - mu) ** 2, axis=-1, keepdims=True)
    return (x - mu) * jax.lax.rsqrt(var + LN_EPS) * g + b


# ------------------------------ fused kernel ------------------------------
def fused_kernel(ids_ref, mask_ref, emb_ref, wattn_ref, w1_ref, w2_ref, wh_ref,
                 bias_ref, o_ref):
    # ---- unpack the small-parameter pack (one VMEM load, static slices) ----
    bias = bias_ref[...]                                   # (16, 128) f32
    bq   = bias[_BQ:_BQ + 1,   0:H]                        # pre-scaled by 1/sqrt(H)
    bk   = bias[_BK:_BK + 1,   0:H]
    bv   = bias[_BV:_BV + 1,   0:H]
    bo   = bias[_BO:_BO + 1,   0:H]
    ln1g = bias[_L1G:_L1G + 1, 0:H]
    ln1b = bias[_L1B:_L1B + 1, 0:H]
    b1   = bias[_B1:_B1 + 1,   0:F]
    b2   = bias[_B2:_B2 + 1,   0:H]
    ln2g = bias[_L2G:_L2G + 1, 0:H]
    ln2b = bias[_L2B:_L2B + 1, 0:H]
    bh   = bias[_BH:_BH + 1,   0:OUT_DIM]

    wattn = wattn_ref[...]                                 # (H, 4H) bf16: [Wq|Wk|Wv|Wo]
    wq = wattn[:, 0:H]                                     # already scaled by 1/sqrt(H)
    wk = wattn[:, H:2 * H]
    wv = wattn[:, 2 * H:3 * H]
    wo = wattn[:, 3 * H:4 * H]

    # ---- in-kernel embedding gather: one-hot compare + MXU matmul ----
    ids = ids_ref[...]                                     # (BS, 1) int32
    col = jax.lax.broadcasted_iota(jnp.int32, (BS, VOCAB), 1)
    onehot = (col == ids).astype(jnp.bfloat16)             # (BS, VOCAB)
    x = jnp.dot(onehot, emb_ref[...],
                preferred_element_type=jnp.float32)        # (BS, H) f32

    # CLS rows (token 0 of every batch element) — only these go past attention.
    x_cls = jnp.concatenate([x[b * S:b * S + 1, :] for b in range(B)], axis=0)  # (B, H)

    x_bf = x.astype(jnp.bfloat16)
    xc_bf = x_cls.astype(jnp.bfloat16)

    # ---- projections: K,V for all tokens, Q only for the B CLS rows ----
    k = jnp.dot(x_bf, wk, preferred_element_type=jnp.float32) + bk     # (BS, H)
    v = jnp.dot(x_bf, wv, preferred_element_type=jnp.float32) + bv     # (BS, H)
    q = jnp.dot(xc_bf, wq, preferred_element_type=jnp.float32) + bq    # (B, H), scaled

    # ---- attention scores for CLS queries over all flattened keys ----
    scores = jax.lax.dot_general(
        q.astype(jnp.bfloat16), k.astype(jnp.bfloat16),
        dimension_numbers=(((1,), (1,)), ((), ())),
        preferred_element_type=jnp.float32)                             # (B, BS)

    # In-kernel mask: query b attends key j iff j belongs to batch b's block AND the
    # key is not padded (attention_mask == 1).  Built from iota compares (VPU filler).
    j_idx = jax.lax.broadcasted_iota(jnp.int32, (B, BS), 1)
    b_idx = jax.lax.broadcasted_iota(jnp.int32, (B, BS), 0)
    same_block = (j_idx >= b_idx * S) & (j_idx < (b_idx + 1) * S)
    key_keep = mask_ref[...] > 0.5                                      # (1, BS) bool
    scores = jnp.where(same_block & key_keep, scores, -1e9)

    # ---- softmax (f32; approx reciprocal runs on the EUP slot) ----
    smax = jnp.max(scores, axis=-1, keepdims=True)
    e = jnp.exp(scores - smax)
    p = e * pl.reciprocal(jnp.sum(e, axis=-1, keepdims=True), approx=True)  # (B, BS)

    attn = jnp.dot(p.astype(jnp.bfloat16), v.astype(jnp.bfloat16),
                   preferred_element_type=jnp.float32)                  # (B, H)
    attn_out = jnp.dot(attn.astype(jnp.bfloat16), wo,
                       preferred_element_type=jnp.float32) + bo         # (B, H)

    y = _layernorm(x_cls + attn_out, ln1g, ln1b)                        # (B, H) f32

    # ---- feed-forward (only on the B CLS rows) ----
    # NOTE: tanh-approx GELU (PyTorch nn.GELU defaults to exact erf; delta is tiny and
    # the backbone here is synthetic anyway — kept for robust Mosaic lowering).
    hdd = jax.nn.gelu(
        jnp.dot(y.astype(jnp.bfloat16), w1_ref[...],
                preferred_element_type=jnp.float32) + b1,
        approximate=True)                                               # (B, F)
    ffn = jnp.dot(hdd.astype(jnp.bfloat16), w2_ref[...],
                  preferred_element_type=jnp.float32) + b2              # (B, H)

    out = _layernorm(y + ffn, ln2g, ln2b)                               # (B, H)

    # ---- regression head: Linear(H -> OUT_DIM) on the CLS rows ----
    o_ref[...] = (jnp.dot(out.astype(jnp.bfloat16), wh_ref[...],
                          preferred_element_type=jnp.float32) + bh)     # (B, OUT_DIM)


def run_fused(ids, mask_flat, params):
    vmem = pl.BlockSpec(memory_space=pltpu.MemorySpace.VMEM)
    return pl.pallas_call(
        fused_kernel,
        out_shape=jax.ShapeDtypeStruct((B, OUT_DIM), jnp.float32),
        in_specs=[vmem] * 8,
        out_specs=vmem,
    )(ids, mask_flat,
      params["emb"], params["w_attn"], params["w1"], params["w2"],
      params["w_head"], params["bias_pack"])


# ------------------------------- full forward -------------------------------
@jax.jit
def molformer_with_regression_head(input_ids, attention_mask, params):
    # Only trivial layout plumbing stays in the wrapper (two tiny reshapes + a cast);
    # the gather, the attention mask and the CLS selection all happen in-kernel.
    ids = input_ids.reshape(BS, 1).astype(jnp.int32)               # (BS, 1)
    mask_flat = attention_mask.reshape(1, BS).astype(jnp.float32)  # (1, BS)
    return run_fused(ids, mask_flat, params)                       # (B, OUT_DIM)


# --------------------------------- params ---------------------------------
def init_params(key):
    ks = jax.random.split(key, 8)
    nrm = lambda k, shape: (0.02 * jax.random.normal(k, shape)).astype(jnp.float32)

    # Attention weights packed into one (H, 4H) bf16 buffer: [Wq | Wk | Wv | Wo].
    # The 1/sqrt(H) attention scale is folded into Wq (and bq) at init time.
    scale = 1.0 / math.sqrt(H)
    wq = nrm(ks[1], (H, H)) * scale
    wk = nrm(ks[2], (H, H))
    wv = nrm(ks[3], (H, H))
    wo = nrm(ks[4], (H, H))
    w_attn = jnp.concatenate([wq, wk, wv, wo], axis=1).astype(jnp.bfloat16)

    # All tiny bias / LayerNorm vectors packed into one (16, 128) f32 buffer.
    bias_pack = jnp.zeros((_BIAS_ROWS, 128), jnp.float32)
    bias_pack = bias_pack.at[_L1G, 0:H].set(1.0)   # LayerNorm1 gamma
    bias_pack = bias_pack.at[_L2G, 0:H].set(1.0)   # LayerNorm2 gamma
    # (all additive biases are zero at init; bq would be pre-scaled by `scale` too)

    return {
        "emb":       nrm(ks[0], (VOCAB, H)).astype(jnp.bfloat16),
        "w_attn":    w_attn,
        "w1":        nrm(ks[5], (H, F)).astype(jnp.bfloat16),
        "w2":        nrm(ks[6], (F, H)).astype(jnp.bfloat16),
        "w_head":    nrm(ks[7], (H, OUT_DIM)).astype(jnp.bfloat16),
        "bias_pack": bias_pack,
    }


if __name__ == "__main__":
    key = jax.random.PRNGKey(0)
    k_param, k_ids = jax.random.split(key)
    params = init_params(k_param)

    input_ids = jax.random.randint(k_ids, (B, S), 0, VOCAB, dtype=jnp.int32)
    attention_mask = jnp.ones((B, S), dtype=jnp.int32)
    attention_mask = attention_mask.at[1, -2:].set(0)   # pad last 2 tokens of seq 1

    out = molformer_with_regression_head(input_ids, attention_mask, params)
    out = jax.block_until_ready(out)
    assert out.shape == (B, OUT_DIM) and out.dtype == jnp.float32
    assert bool(jnp.all(jnp.isfinite(out)))
    print("KERNEL_OK")
</pallas_src>

<mosaic_0001>
module attributes {stable_mosaic.version = 11 : i64} {
  func.func @fused_kernel(%arg0: memref<16x1xi32, #tpu.memory_space<vmem>>, %arg1: memref<1x16xf32, #tpu.memory_space<vmem>>, %arg2: memref<64x32xbf16, #tpu.memory_space<vmem>>, %arg3: memref<32x128xbf16, #tpu.memory_space<vmem>>, %arg4: memref<32x128xbf16, #tpu.memory_space<vmem>>, %arg5: memref<128x32xbf16, #tpu.memory_space<vmem>>, %arg6: memref<32x1xbf16, #tpu.memory_space<vmem>>, %arg7: memref<16x128xf32, #tpu.memory_space<vmem>>, %arg8: memref<2x1xf32, #tpu.memory_space<vmem>>) attributes {dimension_semantics = [], scalar_prefetch = 0 : i64, scratch_operands = 0 : i64, tpu.core_type = #tpu.core_type<tc>} {
    %c0 = arith.constant 0 : index
    %c0_0 = arith.constant 0 : index
    %0 = vector.load %arg7[%c0, %c0_0] : memref<16x128xf32, #tpu.memory_space<vmem>>, vector<16x128xf32>
    %1 = vector.extract_strided_slice %0 {offsets = [0, 0], sizes = [1, 32], strides = [1, 1]} : vector<16x128xf32> to vector<1x32xf32>
    %2 = vector.extract_strided_slice %0 {offsets = [1, 0], sizes = [1, 32], strides = [1, 1]} : vector<16x128xf32> to vector<1x32xf32>
    %3 = vector.extract_strided_slice %0 {offsets = [2, 0], sizes = [1, 32], strides = [1, 1]} : vector<16x128xf32> to vector<1x32xf32>
    %4 = vector.extract_strided_slice %0 {offsets = [3, 0], sizes = [1, 32], strides = [1, 1]} : vector<16x128xf32> to vector<1x32xf32>
    %5 = vector.extract_strided_slice %0 {offsets = [4, 0], sizes = [1, 32], strides = [1, 1]} : vector<16x128xf32> to vector<1x32xf32>
    %6 = vector.extract_strided_slice %0 {offsets = [5, 0], sizes = [1, 32], strides = [1, 1]} : vector<16x128xf32> to vector<1x32xf32>
    %7 = vector.extract_strided_slice %0 {offsets = [6, 0], sizes = [1, 128], strides = [1, 1]} : vector<16x128xf32> to vector<1x128xf32>
    %8 = vector.extract_strided_slice %0 {offsets = [7, 0], sizes = [1, 32], strides = [1, 1]} : vector<16x128xf32> to vector<1x32xf32>
    %9 = vector.extract_strided_slice %0 {offsets = [8, 0], sizes = [1, 32], strides = [1, 1]} : vector<16x128xf32> to vector<1x32xf32>
    %10 = vector.extract_strided_slice %0 {offsets = [9, 0], sizes = [1, 32], strides = [1, 1]} : vector<16x128xf32> to vector<1x32xf32>
    %11 = vector.extract_strided_slice %0 {offsets = [10, 0], sizes = [1, 1], strides = [1, 1]} : vector<16x128xf32> to vector<1x1xf32>
    %c0_1 = arith.constant 0 : index
    %c0_2 = arith.constant 0 : index
    %12 = vector.load %arg3[%c0_1, %c0_2] : memref<32x128xbf16, #tpu.memory_space<vmem>>, vector<32x128xbf16>
    %13 = vector.extract_strided_slice %12 {offsets = [0, 0], sizes = [32, 32], strides = [1, 1]} : vector<32x128xbf16> to vector<32x32xbf16>
    %14 = vector.extract_strided_slice %12 {offsets = [0, 32], sizes = [32, 32], strides = [1, 1]} : vector<32x128xbf16> to vector<32x32xbf16>
    %15 = vector.extract_strided_slice %12 {offsets = [0, 64], sizes = [32, 32], strides = [1, 1]} : vector<32x128xbf16> to vector<32x32xbf16>
    %16 = vector.extract_strided_slice %12 {offsets = [0, 96], sizes = [32, 32], strides = [1, 1]} : vector<32x128xbf16> to vector<32x32xbf16>
    %c0_3 = arith.constant 0 : index
    %c0_4 = arith.constant 0 : index
    %17 = vector.load %arg0[%c0_3, %c0_4] : memref<16x1xi32, #tpu.memory_space<vmem>>, vector<16x1xi32>
    %18 = tpu.iota {dimensions = array<i32: 1>} : vector<16x64xi32>
    %19 = vector.broadcast %17 : vector<16x1xi32> to vector<16x64xi32>
    %20 = arith.cmpi eq, %18, %19 : vector<16x64xi32>
    %21 = arith.extui %20 : vector<16x64xi1> to vector<16x64xi32>
    %22 = arith.sitofp %21 : vector<16x64xi32> to vector<16x64xf32>
    %23 = arith.truncf %22 : vector<16x64xf32> to vector<16x64xbf16>
    %c0_5 = arith.constant 0 : index
    %c0_6 = arith.constant 0 : index
    %24 = vector.load %arg2[%c0_5, %c0_6] : memref<64x32xbf16, #tpu.memory_space<vmem>>, vector<64x32xbf16>
    %cst = arith.constant dense<0.000000e+00> : vector<16x32xf32>
    %25 = tpu.matmul %23, %24, %cst {dimension_numbers = #tpu.dot_dimension_numbers<[1], [0], [0], [1], [0, 0, 1, 1], [], []>} : vector<16x64xbf16>, vector<64x32xbf16>, vector<16x32xf32> -> vector<16x32xf32>
    %26 = vector.extract_strided_slice %25 {offsets = [0, 0], sizes = [1, 32], strides = [1, 1]} : vector<16x32xf32> to vector<1x32xf32>
    %27 = vector.extract_strided_slice %25 {offsets = [8, 0], sizes = [1, 32], strides = [1, 1]} : vector<16x32xf32> to vector<1x32xf32>
    %28 = tpu.concatenate %26, %27 in 0 : vector<1x32xf32>, vector<1x32xf32> -> vector<2x32xf32>
    %29 = arith.truncf %25 : vector<16x32xf32> to vector<16x32xbf16>
    %30 = arith.truncf %28 : vector<2x32xf32> to vector<2x32xbf16>
    %cst_7 = arith.constant dense<0.000000e+00> : vector<16x32xf32>
    %31 = tpu.matmul %29, %14, %cst_7 {dimension_numbers = #tpu.dot_dimension_numbers<[1], [0], [0], [1], [0, 0, 1, 1], [], []>} : vector<16x32xbf16>, vector<32x32xbf16>, vector<16x32xf32> -> vector<16x32xf32>
    %32 = vector.broadcast %2 : vector<1x32xf32> to vector<16x32xf32>
    %33 = arith.addf %31, %32 : vector<16x32xf32>
    %cst_8 = arith.constant dense<0.000000e+00> : vector<16x32xf32>
    %34 = tpu.matmul %29, %15, %cst_8 {dimension_numbers = #tpu.dot_dimension_numbers<[1], [0], [0], [1], [0, 0, 1, 1], [], []>} : vector<16x32xbf16>, vector<32x32xbf16>, vector<16x32xf32> -> vector<16x32xf32>
    %35 = vector.broadcast %3 : vector<1x32xf32> to vector<16x32xf32>
    %36 = arith.addf %34, %35 : vector<16x32xf32>
    %cst_9 = arith.constant dense<0.000000e+00> : vector<2x32xf32>
    %37 = tpu.matmul %30, %13, %cst_9 {dimension_numbers = #tpu.dot_dimension_numbers<[1], [0], [0], [1], [0, 0, 1, 1], [], []>} : vector<2x32xbf16>, vector<32x32xbf16>, vector<2x32xf32> -> vector<2x32xf32>
    %38 = vector.broadcast %1 : vector<1x32xf32> to vector<2x32xf32>
    %39 = arith.addf %37, %38 : vector<2x32xf32>
    %40 = arith.truncf %39 : vector<2x32xf32> to vector<2x32xbf16>
    %41 = arith.truncf %33 : vector<16x32xf32> to vector<16x32xbf16>
    %cst_10 = arith.constant dense<0.000000e+00> : vector<2x16xf32>
    %42 = tpu.matmul %40, %41, %cst_10 {dimension_numbers = #tpu.dot_dimension_numbers<[1], [1], [0], [0], [0, 0, 1, 0], [], []>} : vector<2x32xbf16>, vector<16x32xbf16>, vector<2x16xf32> -> vector<2x16xf32>
    %43 = tpu.iota {dimensions = array<i32: 1>} : vector<2x16xi32>
    %44 = tpu.iota {dimensions = array<i32: 0>} : vector<2x16xi32>
    %c8_i32 = arith.constant 8 : i32
    %45 = vector.broadcast %c8_i32 : i32 to vector<2x16xi32>
    %46 = arith.muli %44, %45 : vector<2x16xi32>
    %47 = arith.cmpi sge, %43, %46 : vector<2x16xi32>
    %c1_i32 = arith.constant 1 : i32
    %48 = vector.broadcast %c1_i32 : i32 to vector<2x16xi32>
    %49 = arith.addi %44, %48 : vector<2x16xi32>
    %c8_i32_11 = arith.constant 8 : i32
    %50 = vector.broadcast %c8_i32_11 : i32 to vector<2x16xi32>
    %51 = arith.muli %49, %50 : vector<2x16xi32>
    %52 = arith.cmpi slt, %43, %51 : vector<2x16xi32>
    %53 = arith.andi %47, %52 : vector<2x16xi1>
    %c0_12 = arith.constant 0 : index
    %c0_13 = arith.constant 0 : index
    %54 = vector.load %arg1[%c0_12, %c0_13] : memref<1x16xf32, #tpu.memory_space<vmem>>, vector<1x16xf32>
    %cst_14 = arith.constant 5.000000e-01 : f32
    %55 = vector.broadcast %cst_14 : f32 to vector<1x16xf32>
    %56 = arith.cmpf ogt, %54, %55 : vector<1x16xf32>
    %57 = vector.broadcast %56 : vector<1x16xi1> to vector<2x16xi1>
    %58 = arith.andi %53, %57 : vector<2x16xi1>
    %cst_15 = arith.constant -1.000000e+09 : f32
    %59 = vector.broadcast %cst_15 : f32 to vector<2x16xf32>
    %60 = arith.select %58, %42, %59 : vector<2x16xi1>, vector<2x16xf32>
    %cst_16 = arith.constant dense<0xFF800000> : vector<2xf32>
    %61 = vector.multi_reduction <maximumf>, %60, %cst_16 [1] : vector<2x16xf32> to vector<2xf32>
    %62 = vector.shape_cast %61 : vector<2xf32> to vector<2x1xf32>
    %63 = vector.broadcast %62 : vector<2x1xf32> to vector<2x16xf32>
    %64 = arith.subf %60, %63 : vector<2x16xf32>
    %65 = math.exp %64 : vector<2x16xf32>
    %cst_17 = arith.constant dense<0.000000e+00> : vector<2xf32>
    %66 = vector.multi_reduction <add>, %65, %cst_17 [1] : vector<2x16xf32> to vector<2xf32>
    %67 = vector.shape_cast %66 : vector<2xf32> to vector<2x1xf32>
    %68 = tpu.reciprocal %67 {approx = true} : vector<2x1xf32> -> vector<2x1xf32>
    %69 = vector.broadcast %68 : vector<2x1xf32> to vector<2x16xf32>
    %70 = arith.mulf %65, %69 : vector<2x16xf32>
    %71 = arith.truncf %70 : vector<2x16xf32> to vector<2x16xbf16>
    %72 = arith.truncf %36 : vector<16x32xf32> to vector<16x32xbf16>
    %cst_18 = arith.constant dense<0.000000e+00> : vector<2x32xf32>
    %73 = tpu.matmul %71, %72, %cst_18 {dimension_numbers = #tpu.dot_dimension_numbers<[1], [0], [0], [1], [0, 0, 1, 1], [], []>} : vector<2x16xbf16>, vector<16x32xbf16>, vector<2x32xf32> -> vector<2x32xf32>
    %74 = arith.truncf %73 : vector<2x32xf32> to vector<2x32xbf16>
    %cst_19 = arith.constant dense<0.000000e+00> : vector<2x32xf32>
    %75 = tpu.matmul %74, %16, %cst_19 {dimension_numbers = #tpu.dot_dimension_numbers<[1], [0], [0], [1], [0, 0, 1, 1], [], []>} : vector<2x32xbf16>, vector<32x32xbf16>, vector<2x32xf32> -> vector<2x32xf32>
    %76 = vector.broadcast %4 : vector<1x32xf32> to vector<2x32xf32>
    %77 = arith.addf %75, %76 : vector<2x32xf32>
    %78 = arith.addf %28, %77 : vector<2x32xf32>
    %cst_20 = arith.constant dense<0.000000e+00> : vector<2xf32>
    %79 = vector.multi_reduction <add>, %78, %cst_20 [1] : vector<2x32xf32> to vector<2xf32>
    %80 = vector.shape_cast %79 : vector<2xf32> to vector<2x1xf32>
    %cst_21 = arith.constant 3.200000e+01 : f32
    %81 = vector.broadcast %cst_21 : f32 to vector<2x1xf32>
    %82 = arith.divf %80, %81 : vector<2x1xf32>
    %83 = vector.broadcast %82 : vector<2x1xf32> to vector<2x32xf32>
    %84 = arith.subf %78, %83 : vector<2x32xf32>
    %85 = arith.mulf %84, %84 : vector<2x32xf32>
    %cst_22 = arith.constant dense<0.000000e+00> : vector<2xf32>
    %86 = vector.multi_reduction <add>, %85, %cst_22 [1] : vector<2x32xf32> to vector<2xf32>
    %87 = vector.shape_cast %86 : vector<2xf32> to vector<2x1xf32>
    %cst_23 = arith.constant 3.200000e+01 : f32
    %88 = vector.broadcast %cst_23 : f32 to vector<2x1xf32>
    %89 = arith.divf %87, %88 : vector<2x1xf32>
    %90 = vector.broadcast %82 : vector<2x1xf32> to vector<2x32xf32>
    %91 = arith.subf %78, %90 : vector<2x32xf32>
    %cst_24 = arith.constant 9.99999974E-6 : f32
    %92 = vector.broadcast %cst_24 : f32 to vector<2x1xf32>
    %93 = arith.addf %89, %92 : vector<2x1xf32>
    %94 = math.rsqrt %93 : vector<2x1xf32>
    %95 = vector.broadcast %94 : vector<2x1xf32> to vector<2x32xf32>
    %96 = arith.mulf %91, %95 : vector<2x32xf32>
    %97 = vector.broadcast %5 : vector<1x32xf32> to vector<2x32xf32>
    %98 = arith.mulf %96, %97 : vector<2x32xf32>
    %99 = vector.broadcast %6 : vector<1x32xf32> to vector<2x32xf32>
    %100 = arith.addf %98, %99 : vector<2x32xf32>
    %101 = arith.truncf %100 : vector<2x32xf32> to vector<2x32xbf16>
    %c0_25 = arith.constant 0 : index
    %c0_26 = arith.constant 0 : index
    %102 = vector.load %arg4[%c0_25, %c0_26] : memref<32x128xbf16, #tpu.memory_space<vmem>>, vector<32x128xbf16>
    %cst_27 = arith.constant dense<0.000000e+00> : vector<2x128xf32>
    %103 = tpu.matmul %101, %102, %cst_27 {dimension_numbers = #tpu.dot_dimension_numbers<[1], [0], [0], [1], [0, 0, 1, 1], [], []>} : vector<2x32xbf16>, vector<32x128xbf16>, vector<2x128xf32> -> vector<2x128xf32>
    %104 = vector.broadcast %7 : vector<1x128xf32> to vector<2x128xf32>
    %105 = arith.addf %103, %104 : vector<2x128xf32>
    %106 = arith.mulf %105, %105 : vector<2x128xf32>
    %107 = arith.mulf %105, %106 : vector<2x128xf32>
    %cst_28 = arith.constant 4.471500e-02 : f32
    %108 = vector.broadcast %cst_28 : f32 to vector<2x128xf32>
    %109 = arith.mulf %108, %107 : vector<2x128xf32>
    %110 = arith.addf %105, %109 : vector<2x128xf32>
    %cst_29 = arith.constant 0.797884583 : f32
    %111 = vector.broadcast %cst_29 : f32 to vector<2x128xf32>
    %112 = arith.mulf %111, %110 : vector<2x128xf32>
    %113 = math.tanh %112 : vector<2x128xf32>
    %cst_30 = arith.constant 1.000000e+00 : f32
    %114 = vector.broadcast %cst_30 : f32 to vector<2x128xf32>
    %115 = arith.addf %114, %113 : vector<2x128xf32>
    %cst_31 = arith.constant 5.000000e-01 : f32
    %116 = vector.broadcast %cst_31 : f32 to vector<2x128xf32>
    %117 = arith.mulf %116, %115 : vector<2x128xf32>
    %118 = arith.mulf %105, %117 : vector<2x128xf32>
    %119 = arith.truncf %118 : vector<2x128xf32> to vector<2x128xbf16>
    %c0_32 = arith.constant 0 : index
    %c0_33 = arith.constant 0 : index
    %120 = vector.load %arg5[%c0_32, %c0_33] : memref<128x32xbf16, #tpu.memory_space<vmem>>, vector<128x32xbf16>
    %cst_34 = arith.constant dense<0.000000e+00> : vector<2x32xf32>
    %121 = tpu.matmul %119, %120, %cst_34 {dimension_numbers = #tpu.dot_dimension_numbers<[1], [0], [0], [1], [0, 0, 1, 1], [], []>} : vector<2x128xbf16>, vector<128x32xbf16>, vector<2x32xf32> -> vector<2x32xf32>
    %122 = vector.broadcast %8 : vector<1x32xf32> to vector<2x32xf32>
    %123 = arith.addf %121, %122 : vector<2x32xf32>
    %124 = arith.addf %100, %123 : vector<2x32xf32>
    %cst_35 = arith.constant dense<0.000000e+00> : vector<2xf32>
    %125 = vector.multi_reduction <add>, %124, %cst_35 [1] : vector<2x32xf32> to vector<2xf32>
    %126 = vector.shape_cast %125 : vector<2xf32> to vector<2x1xf32>
    %cst_36 = arith.constant 3.200000e+01 : f32
    %127 = vector.broadcast %cst_36 : f32 to vector<2x1xf32>
    %128 = arith.divf %126, %127 : vector<2x1xf32>
    %129 = vector.broadcast %128 : vector<2x1xf32> to vector<2x32xf32>
    %130 = arith.subf %124, %129 : vector<2x32xf32>
    %131 = arith.mulf %130, %130 : vector<2x32xf32>
    %cst_37 = arith.constant dense<0.000000e+00> : vector<2xf32>
    %132 = vector.multi_reduction <add>, %131, %cst_37 [1] : vector<2x32xf32> to vector<2xf32>
    %133 = vector.shape_cast %132 : vector<2xf32> to vector<2x1xf32>
    %cst_38 = arith.constant 3.200000e+01 : f32
    %134 = vector.broadcast %cst_38 : f32 to vector<2x1xf32>
    %135 = arith.divf %133, %134 : vector<2x1xf32>
    %136 = vector.broadcast %128 : vector<2x1xf32> to vector<2x32xf32>
    %137 = arith.subf %124, %136 : vector<2x32xf32>
    %cst_39 = arith.constant 9.99999974E-6 : f32
    %138 = vector.broadcast %cst_39 : f32 to vector<2x1xf32>
    %139 = arith.addf %135, %138 : vector<2x1xf32>
    %140 = math.rsqrt %139 : vector<2x1xf32>
    %141 = vector.broadcast %140 : vector<2x1xf32> to vector<2x32xf32>
    %142 = arith.mulf %137, %141 : vector<2x32xf32>
    %143 = vector.broadcast %9 : vector<1x32xf32> to vector<2x32xf32>
    %144 = arith.mulf %142, %143 : vector<2x32xf32>
    %145 = vector.broadcast %10 : vector<1x32xf32> to vector<2x32xf32>
    %146 = arith.addf %144, %145 : vector<2x32xf32>
    %147 = arith.truncf %146 : vector<2x32xf32> to vector<2x32xbf16>
    %c0_40 = arith.constant 0 : index
    %c0_41 = arith.constant 0 : index
    %148 = vector.load %arg6[%c0_40, %c0_41] : memref<32x1xbf16, #tpu.memory_space<vmem>>, vector<32x1xbf16>
    %cst_42 = arith.constant dense<0.000000e+00> : vector<2x1xf32>
    %149 = tpu.matmul %147, %148, %cst_42 {dimension_numbers = #tpu.dot_dimension_numbers<[1], [0], [0], [1], [0, 0, 1, 1], [], []>} : vector<2x32xbf16>, vector<32x1xbf16>, vector<2x1xf32> -> vector<2x1xf32>
    %150 = vector.broadcast %11 : vector<1x1xf32> to vector<2x1xf32>
    %151 = arith.addf %149, %150 : vector<2x1xf32>
    %c0_43 = arith.constant 0 : index
    %c0_44 = arith.constant 0 : index
    %152 = vector.load %arg8[%c0_43, %c0_44] : memref<2x1xf32, #tpu.memory_space<vmem>>, vector<2x1xf32>
    tpu.vector_store %arg8[%c0_43, %c0_44], %151 {strides = array<i32>} : memref<2x1xf32, #tpu.memory_space<vmem>>, vector<2x1xf32>,
    return
  }
}

</mosaic_0001>

<llo_original>
// kernel: molformer_with_regression_head.1
$region0: #{molformer_with_regression_head.1}
  #allocation0 [shape = 'u32[]', space=smem, size = 0x4, offset = 0x4, fixed_abs, tag = 'smem constant byte address 0x4 - core index']
  #allocation1 [shape = 'u32[72,128]{1,0:T(1,128)}', space=vmem, size = 0x9000, scoped, tag = 'internal scratch']
  %s0 = inlined_call_operand.vmem [shape: s32[16,1], index: 0, kind: input, shape index: {}]
  %s1 = inlined_call_operand.vmem [shape: f32[1,16], index: 1, kind: input, shape index: {}]
  %s2 = inlined_call_operand.vmem [shape: bf16[64,32], index: 2, kind: input, shape index: {}]
  %s3 = inlined_call_operand.vmem [shape: bf16[32,128], index: 3, kind: input, shape index: {}]
  %s4 = inlined_call_operand.vmem [shape: bf16[32,128], index: 4, kind: input, shape index: {}]
  %s5 = inlined_call_operand.vmem [shape: bf16[128,32], index: 5, kind: input, shape index: {}]
  %s6 = inlined_call_operand.vmem [shape: bf16[32,1], index: 6, kind: input, shape index: {}]
  %s7 = inlined_call_operand.vmem [shape: f32[16,128], index: 7, kind: input, shape index: {}]
  %s8 = inlined_call_operand.vmem [shape: f32[2,1], index: 8, kind: output, shape index: {}]
  %s9 = sld [smem:[#allocation0]]
  $region42: #{molformer_with_regression_head.1} parent=0
    _
  %s11 = ssub.s32 1, %s9
  %s12 = scalar_select 0, %s11, %s9
  // Predicated region
  $region2: #{molformer_with_regression_head.1} parent=0 // pred_check
    _
  $region3: #{molformer_with_regression_head.1} parent=0 // pred_check_branch
    %14 = sbr.rel (0) target = $region5
  $region4: #{molformer_with_regression_head.1} parent=0 // pred_region
    _
  $region5: #{molformer_with_regression_head.1} parent=0 // pred_fallthru
    _
  // Predicated region
  $region6: #{molformer_with_regression_head.1} parent=0 // pred_check
    _
  $region7: #{molformer_with_regression_head.1} parent=0 // pred_check_branch
    %16 = sbr.rel (0) target = $region9
  $region8: #{molformer_with_regression_head.1} parent=0 // pred_region
    _
  $region9: #{molformer_with_regression_head.1} parent=0 // pred_fallthru
    _
  // Predicated region
  $region10: #{molformer_with_regression_head.1} parent=0 // pred_check
    _
  $region11: #{molformer_with_regression_head.1} parent=0 // pred_check_branch
    %18 = sbr.rel (0) target = $region13
  $region12: #{molformer_with_regression_head.1} parent=0 // pred_region
    _
  $region13: #{molformer_with_regression_head.1} parent=0 // pred_fallthru
    _
  // Predicated region
  $region14: #{molformer_with_regression_head.1} parent=0 // pred_check
    _
  $region15: #{molformer_with_regression_head.1} parent=0 // pred_check_branch
    %20 = sbr.rel (0) target = $region17
  $region16: #{molformer_with_regression_head.1} parent=0 // pred_region
    _
  $region17: #{molformer_with_regression_head.1} parent=0 // pred_fallthru
    _
  // Predicated region
  $region18: #{molformer_with_regression_head.1} parent=0 // pred_check
    _
  $region19: #{molformer_with_regression_head.1} parent=0 // pred_check_branch
    %22 = sbr.rel (0) target = $region21
  $region20: #{molformer_with_regression_head.1} parent=0 // pred_region
    _
  $region21: #{molformer_with_regression_head.1} parent=0 // pred_fallthru
    _
  // Predicated region
  $region22: #{molformer_with_regression_head.1} parent=0 // pred_check
    _
  $region23: #{molformer_with_regression_head.1} parent=0 // pred_check_branch
    %24 = sbr.rel (0) target = $region25
  $region24: #{molformer_with_regression_head.1} parent=0 // pred_region
    _
  $region25: #{molformer_with_regression_head.1} parent=0 // pred_fallthru
    _
  // Predicated region
  $region26: #{molformer_with_regression_head.1} parent=0 // pred_check
    _
  $region27: #{molformer_with_regression_head.1} parent=0 // pred_check_branch
    %26 = sbr.rel (0) target = $region29
  $region28: #{molformer_with_regression_head.1} parent=0 // pred_region
    _
  $region29: #{molformer_with_regression_head.1} parent=0 // pred_fallthru
    _
  // Predicated region
  $region30: #{molformer_with_regression_head.1} parent=0 // pred_check
    _
  $region31: #{molformer_with_regression_head.1} parent=0 // pred_check_branch
    %28 = sbr.rel (0) target = $region33
  $region32: #{molformer_with_regression_head.1} parent=0 // pred_region
    _
  $region33: #{molformer_with_regression_head.1} parent=0 // pred_fallthru
    _
  %v30 = vld [vmem:[%s7] sm:$0xff]
  %v31 = vld [vmem:[%s7 + $0x8] sm:$0xff]
  %v32 = vld [vmem:[%s3] sm:$0xf]
  %v33 = vld [vmem:[%s3 + $0x4] sm:$0xf]
  %v34 = vld [vmem:[%s3 + $0x8] sm:$0xf]
  %v35 = vld [vmem:[%s3 + $0xc] sm:$0xf]
  %v36 = vld [vmem:[%s0] sm:$0xff]
  %v37 = vld [vmem:[%s0 + $0x8] sm:$0xff]
  %v38 = vlaneseq
  %v39 = vand.u32 %v38, 127
  %40 = vset.pattern.permute.xlu0 0
  %41 = vperm.xlu0 %40, %v36
  %v42 = vpop.permute.xlu0 %41
  %43 = vset.pattern.permute.xlu0 0
  %44 = vperm.xlu0 %43, %v37
  %v45 = vpop.permute.xlu0 %44
  %vm46 = vcmp.eq.s32.totalorder %v39, %v42
  %vm47 = vcmp.eq.s32.totalorder %v39, %v45
  %v48 = vsel %vm46, 1, 0
  %v49 = vsel %vm47, 1, 0
  %v50 = vcvt.s32.f32 %v48
  %v51 = vcvt.s32.f32 %v49
  %v52 = vpack.c.bf16 %v51, %v50
  %v53 = vld [vmem:[%s2] sm:$0xf]
  %v54 = vld [vmem:[%s2 + $0x4] sm:$0xf]
  %v55 = vld [vmem:[%s2 + $0x8] sm:$0xf]
  %v56 = vld [vmem:[%s2 + $0xc] sm:$0xf]
  %v57 = vld [vmem:[%s2 + $0x10] sm:$0xf]
  %v58 = vld [vmem:[%s2 + $0x14] sm:$0xf]
  %v59 = vld [vmem:[%s2 + $0x18] sm:$0xf]
  %v60 = vld [vmem:[%s2 + $0x1c] sm:$0xf]
  %v69 = vunpack.c.l.b16 %v53
  %v70 = vunpack.c.l.b16 %v54
  %v71 = vunpack.c.l.b16 %v55
  %v72 = vunpack.c.l.b16 %v56
  %v73 = vunpack.c.l.b16 %v57
  %v74 = vunpack.c.l.b16 %v58
  %v75 = vunpack.c.l.b16 %v59
  %v76 = vunpack.c.l.b16 %v60
  %v77 = vpack.c.b16 %v70, %v69
  %v78 = vpack.c.b16 %v72, %v71
  %v79 = vpack.c.b16 %v74, %v73
  %v80 = vpack.c.b16 %v76, %v75
  %vm85 = vcmask 523264
  %v87 = vsel %vm85, %v52, 0
  %89 = vmatpush.bf16.msra.mxu0 0
  %90 = vmatpush.bf16.msra.mxu0 0
  %91 = vmatpush.bf16.msra.mxu0 0
  %92 = vmatpush.bf16.msra.mxu0 0
  %93 = vmatpush.bf16.msra.mxu0 %v80
  %94 = vmatpush.bf16.msra.mxu0 %v79
  %95 = vmatpush.bf16.msra.mxu0 %v78
  %96 = vmatpush.bf16.msra.mxu0 %v77
  %97 = vmatmul.bf16.gmra.mxu0 %v87
  %v98 = vpop.f32.mrf.mxu0
  %v99 = vadd.f32 0.0, %v98
  %v100 = vpop.f32.mrf.mxu0
  %v101 = vadd.f32 0.0, %v100
  %102 = vdwg.mxu0
  %v104 = vrot.slane %v101, 7
  %vm106 = vcmask 1040384
  %v107 = vsel %vm106, %v99, %v104
  %v108 = vpack.c.bf16 %v101, %v99
  %v109 = vpack.c.bf16 %v107, %v107
  %v110 = vperm.slane %v30, 1
  %v115 = vunpack.c.l.b16 %v32
  %v116 = vunpack.c.l.b16 %v33
  %v117 = vunpack.c.l.b16 %v34
  %v118 = vunpack.c.l.b16 %v35
  %v119 = vpack.c.b16 %v116, %v115
  %v120 = vpack.c.b16 %v118, %v117
  %121 = vrot.lane.b32.xlu0 %v119, 96
  %v122 = vpop.permute.xlu0 %121
  %123 = vrot.lane.b32.xlu0 %v120, 96
  %v124 = vpop.permute.xlu0 %123
  %vm127 = vcmask 261120
  %v129 = vsel %vm127, %v108, 0
  %131 = vmatpush.bf16.msra.mxu0 0
  %132 = vmatpush.bf16.msra.mxu0 0
  %133 = vmatpush.bf16.msra.mxu0 0
  %134 = vmatpush.bf16.msra.mxu0 0
  %135 = vmatpush.bf16.msra.mxu0 0
  %136 = vmatpush.bf16.msra.mxu0 0
  %137 = vmatpush.bf16.msra.mxu0 %v124
  %138 = vmatpush.bf16.msra.mxu0 %v122
  %139 = vmatmul.bf16.gmra.mxu0 %v129
  %v140 = vpop.f32.mrf.mxu0
  %v141 = vadd.f32 %v110, %v140
  %v142 = vpop.f32.mrf.mxu0
  %v143 = vadd.f32 %v110, %v142
  %144 = vdwg.mxu0
  %v145 = vperm.slane %v30, 2
  %146 = vrot.lane.b32.xlu0 %v119, 64
  %v147 = vpop.permute.xlu0 %146
  %148 = vrot.lane.b32.xlu0 %v120, 64
  %v149 = vpop.permute.xlu0 %148
  %152 = vmatpush.bf16.msra.mxu0 0
  %153 = vmatpush.bf16.msra.mxu0 0
  %154 = vmatpush.bf16.msra.mxu0 0
  %155 = vmatpush.bf16.msra.mxu0 0
  %156 = vmatpush.bf16.msra.mxu0 0
  %157 = vmatpush.bf16.msra.mxu0 0
  %158 = vmatpush.bf16.msra.mxu0 %v149
  %159 = vmatpush.bf16.msra.mxu0 %v147
  %160 = vmatmul.bf16.gmra.mxu0 %v129
  %v161 = vpop.f32.mrf.mxu0
  %v162 = vadd.f32 %v145, %v161
  %v163 = vpop.f32.mrf.mxu0
  %v164 = vadd.f32 %v145, %v163
  %165 = vdwg.mxu0
  %v166 = vperm.slane %v30, 0
  %v170 = vsel %vm127, %v109, 0
  %172 = vmatpush.bf16.msra.mxu0 0
  %173 = vmatpush.bf16.msra.mxu0 0
  %174 = vmatpush.bf16.msra.mxu0 0
  %175 = vmatpush.bf16.msra.mxu0 0
  %176 = vmatpush.bf16.msra.mxu0 0
  %177 = vmatpush.bf16.msra.mxu0 0
  %178 = vmatpush.bf16.msra.mxu0 %v120
  %179 = vmatpush.bf16.msra.mxu0 %v119
  %180 = vmatmul.bf16.gmra.mxu0 %v170
  %v181 = vpop.f32.mrf.mxu0
  %v182 = vadd.f32 %v166, %v181
  %v183 = vpop.f32.mrf.mxu0
  %184 = vdwg.mxu0
  %v185 = vpack.c.bf16 %v182, %v182
  %v186 = vpack.c.bf16 %v143, %v141
  %v188 = vsel %vm127, %v185, 0
  %v191 = vsel %vm127, %v186, 0
  %193 = vmatpush.bf16.xpose.msra.mxu0 0
  %194 = vmatpush.bf16.xpose.msra.mxu0 0
  %195 = vmatpush.bf16.xpose.msra.mxu0 0
  %196 = vmatpush.bf16.xpose.msra.mxu0 0
  %197 = vmatpush.bf16.xpose.msra.mxu0 0
  %198 = vmatpush.bf16.xpose.msra.mxu0 0
  %199 = vmatpush.bf16.xpose.msra.mxu0 0
  %200 = vmatpush.bf16.xpose.msra.mxu0 %v191
  %201 = vmatmul.bf16.gmra.mxu0 %v188
  %v202 = vpop.f32.mrf.mxu0
  %v203 = vadd.f32 0.0, %v202
  %v204 = vpop.f32.mrf.mxu0
  %205 = vdwg.mxu0
  %v206 = vlaneseq
  %v207 = vshrl.u32 %v206, 7
  %v208 = vmul.u32 %v207, 8
  %vm209 = vcmp.ge.s32.totalorder %v39, %v208
  %v210 = vadd.s32 %v207, 1
  %v211 = vmul.u32 %v210, 8
  %vm212 = vcmp.lt.s32.totalorder %v39, %v211
  %vm213 = vmand %vm209, %vm212
  %v214 = vld [vmem:[%s1] sm:$0x1]
  %vm215 = vcmp.gt.f32.partialorder %v214, 0.5
  %v216 = vsel %vm215, 1, 0
  %v217 = vperm.slane %v216, 0
  %vm218 = vcmp.eq.s32.totalorder %v217, 1
  %vm219 = vmand %vm213, %vm218
  %v220 = vsel %vm219, %v203, -1e+09
  %vm221 = vcmask 123904
  %v222 = vsel %vm221, %v220, -inf
  %223 = vmax.xlane.f32.xlu0 %v222
  %v224 = vpop.xlane.xlu0 %223
  %v225 = vsub.f32 %v220, %v224
  %v226 = vmul.f32 %v225, 1.442695
  %v227 = vpow.pop %v226
  %v228 = vsel %vm221, %v227, 0.0
  %229 = vadd.xlane.f32.xlu0 %v228
  %v230 = vpop.xlane.xlu0 %229
  %v231 = vrcp.pop %v230
  %v232 = vmul.f32 %v227, %v231
  %v233 = vpack.c.bf16 %v232, %v232
  %v234 = vpack.c.bf16 %v164, %v162
  %vm235 = vcmask 130048
  %v237 = vsel %vm235, %v233, 0
  %239 = vmatpush.bf16.msra.mxu0 0
  %240 = vmatpush.bf16.msra.mxu0 0
  %241 = vmatpush.bf16.msra.mxu0 0
  %242 = vmatpush.bf16.msra.mxu0 0
  %243 = vmatpush.bf16.msra.mxu0 0
  %244 = vmatpush.bf16.msra.mxu0 0
  %245 = vmatpush.bf16.msra.mxu0 0
  %246 = vmatpush.bf16.msra.mxu0 %v234
  %247 = vmatmul.bf16.gmra.mxu0 %v237
  %v248 = vpop.f32.mrf.mxu0
  %v249 = vadd.f32 0.0, %v248
  %v250 = vpop.f32.mrf.mxu0
  %251 = vdwg.mxu0
  %v252 = vpack.c.bf16 %v249, %v249
  %v253 = vperm.slane %v30, 3
  %254 = vrot.lane.b32.xlu0 %v119, 32
  %v255 = vpop.permute.xlu0 %254
  %256 = vrot.lane.b32.xlu0 %v120, 32
  %v257 = vpop.permute.xlu0 %256
  %v261 = vsel %vm127, %v252, 0
  %263 = vmatpush.bf16.msra.mxu0 0
  %264 = vmatpush.bf16.msra.mxu0 0
  %265 = vmatpush.bf16.msra.mxu0 0
  %266 = vmatpush.bf16.msra.mxu0 0
  %267 = vmatpush.bf16.msra.mxu0 0
  %268 = vmatpush.bf16.msra.mxu0 0
  %269 = vmatpush.bf16.msra.mxu0 %v257
  %270 = vmatpush.bf16.msra.mxu0 %v255
  %271 = vmatmul.bf16.gmra.mxu0 %v261
  %v272 = vpop.f32.mrf.mxu0
  %v273 = vadd.f32 %v253, %v272
  %v274 = vpop.f32.mrf.mxu0
  %275 = vdwg.mxu0
  %v276 = vadd.f32 %v107, %v273
  %vm277 = vcmask 254976
  %v278 = vsel %vm277, %v276, 0.0
  %279 = vadd.xlane.f32.xlu0 %v278
  %v280 = vpop.xlane.xlu0 %279
  %v281 = vrcp.pop 32.0
  %v282 = vmul.f32 32.0, %v281
  %v283 = vsub.f32 1.0, %v282
  %v284 = vmul.f32 %v281, %v283
  %v285 = vadd.f32 %v281, %v284
  %vm286 = vweird.f32 %v281
  %v287 = vsel %vm286, %v281, %v285
  %v288 = vmul.f32 %v280, %v287
  %v289 = vsub.f32 %v276, %v288
  %v290 = vmul.f32 %v289, %v289
  %v291 = vsel %vm277, %v290, 0.0
  %292 = vadd.xlane.f32.xlu0 %v291
  %v293 = vpop.xlane.xlu0 %292
  %v294 = vmul.f32 %v293, %v287
  %v295 = vadd.f32 %v294, 1e-05
  %v296 = vrsqrt.pop %v295
  %v297 = vmul.f32 %v296, %v295
  %v298 = vmul.f32 %v297, %v296
  %v299 = vmul.f32 0.5, %v298
  %v300 = vsub.f32 1.5, %v299
  %v301 = vmul.f32 %v296, %v300
  %vm302 = vweird.f32 %v295
  %vm303 = vweird.f32 %v296
  %vm304 = vmor %vm302, %vm303
  %v305 = vsel %vm304, %v296, %v301
  %v306 = vmul.f32 %v289, %v305
  %v307 = vperm.slane %v30, 4
  %v308 = vmul.f32 %v306, %v307
  %v309 = vperm.slane %v30, 5
  %v310 = vadd.f32 %v308, %v309
  %v311 = vpack.c.bf16 %v310, %v310
  %v312 = vld [vmem:[%s4] sm:$0xf]
  %v313 = vld [vmem:[%s4 + $0x4] sm:$0xf]
  %v314 = vld [vmem:[%s4 + $0x8] sm:$0xf]
  %v315 = vld [vmem:[%s4 + $0xc] sm:$0xf]
  %v316 = vperm.slane %v30, 6
  %v321 = vunpack.c.l.b16 %v312
  %v322 = vunpack.c.l.b16 %v313
  %v323 = vunpack.c.l.b16 %v314
  %v324 = vunpack.c.l.b16 %v315
  %v325 = vpack.c.b16 %v322, %v321
  %v326 = vpack.c.b16 %v324, %v323
  %v330 = vsel %vm127, %v311, 0
  %332 = vmatpush.bf16.msra.mxu0 0
  %333 = vmatpush.bf16.msra.mxu0 0
  %334 = vmatpush.bf16.msra.mxu0 0
  %335 = vmatpush.bf16.msra.mxu0 0
  %336 = vmatpush.bf16.msra.mxu0 0
  %337 = vmatpush.bf16.msra.mxu0 0
  %338 = vmatpush.bf16.msra.mxu0 %v326
  %339 = vmatpush.bf16.msra.mxu0 %v325
  %340 = vmatmul.bf16.gmra.mxu0 %v330
  %v341 = vpop.f32.mrf.mxu0
  %v342 = vadd.f32 %v316, %v341
  %v343 = vpop.f32.mrf.mxu0
  %344 = vdwg.mxu0
  %v345 = vmul.f32 %v342, %v342
  %v346 = vmul.f32 %v342, %v345
  %v347 = vmul.f32 %v346, 0.044715
  %v348 = vadd.f32 %v342, %v347
  %v349 = vmul.f32 %v348, 0.7978846
  %v350 = vtanh.pop %v349
  %v351 = vadd.f32 %v350, 1.0
  %v352 = vmul.f32 %v351, 0.5
  %v353 = vmul.f32 %v342, %v352
  %v354 = vpack.c.bf16 %v353, %v353
  %v355 = vld [vmem:[%s5] sm:$0xf]
  %v356 = vld [vmem:[%s5 + $0x4] sm:$0xf]
  %v357 = vld [vmem:[%s5 + $0x8] sm:$0xf]
  %v358 = vld [vmem:[%s5 + $0xc] sm:$0xf]
  %v359 = vld [vmem:[%s5 + $0x10] sm:$0xf]
  %v360 = vld [vmem:[%s5 + $0x14] sm:$0xf]
  %v361 = vld [vmem:[%s5 + $0x18] sm:$0xf]
  %v362 = vld [vmem:[%s5 + $0x1c] sm:$0xf]
  %v363 = vld [vmem:[%s5 + $0x20] sm:$0xf]
  %v364 = vld [vmem:[%s5 + $0x24] sm:$0xf]
  %v365 = vld [vmem:[%s5 + $0x28] sm:$0xf]
  %v366 = vld [vmem:[%s5 + $0x2c] sm:$0xf]
  %v367 = vld [vmem:[%s5 + $0x30] sm:$0xf]
  %v368 = vld [vmem:[%s5 + $0x34] sm:$0xf]
  %v369 = vld [vmem:[%s5 + $0x38] sm:$0xf]
  %v370 = vld [vmem:[%s5 + $0x3c] sm:$0xf]
  %v371 = vperm.slane %v30, 7
  %v388 = vunpack.c.l.b16 %v355
  %v389 = vunpack.c.l.b16 %v356
  %v390 = vunpack.c.l.b16 %v357
  %v391 = vunpack.c.l.b16 %v358
  %v392 = vunpack.c.l.b16 %v359
  %v393 = vunpack.c.l.b16 %v360
  %v394 = vunpack.c.l.b16 %v361
  %v395 = vunpack.c.l.b16 %v362
  %v396 = vunpack.c.l.b16 %v363
  %v397 = vunpack.c.l.b16 %v364
  %v398 = vunpack.c.l.b16 %v365
  %v399 = vunpack.c.l.b16 %v366
  %v400 = vunpack.c.l.b16 %v367
  %v401 = vunpack.c.l.b16 %v368
  %v402 = vunpack.c.l.b16 %v369
  %v403 = vunpack.c.l.b16 %v370
  %v404 = vpack.c.b16 %v389, %v388
  %v405 = vpack.c.b16 %v391, %v390
  %v406 = vpack.c.b16 %v393, %v392
  %v407 = vpack.c.b16 %v395, %v394
  %v408 = vpack.c.b16 %v397, %v396
  %v409 = vpack.c.b16 %v399, %v398
  %v410 = vpack.c.b16 %v401, %v400
  %v411 = vpack.c.b16 %v403, %v402
  %420 = vmatpush.bf16.msra.mxu0 %v411
  %421 = vmatpush.bf16.msra.mxu0 %v410
  %422 = vmatpush.bf16.msra.mxu0 %v409
  %423 = vmatpush.bf16.msra.mxu0 %v408
  %424 = vmatpush.bf16.msra.mxu0 %v407
  %425 = vmatpush.bf16.msra.mxu0 %v406
  %426 = vmatpush.bf16.msra.mxu0 %v405
  %427 = vmatpush.bf16.msra.mxu0 %v404
  %428 = vmatmul.bf16.gmra.mxu0 %v354
  %v429 = vpop.f32.mrf.mxu0
  %v430 = vadd.f32 %v371, %v429
  %v431 = vpop.f32.mrf.mxu0
  %432 = vdwg.mxu0
  %v433 = vadd.f32 %v310, %v430
  %v434 = vsel %vm277, %v433, 0.0
  %435 = vadd.xlane.f32.xlu0 %v434
  %v436 = vpop.xlane.xlu0 %435
  %v437 = vmul.f32 %v436, %v287
  %v438 = vsub.f32 %v433, %v437
  %v439 = vmul.f32 %v438, %v438
  %v440 = vsel %vm277, %v439, 0.0
  %441 = vadd.xlane.f32.xlu0 %v440
  %v442 = vpop.xlane.xlu0 %441
  %v443 = vmul.f32 %v442, %v287
  %v444 = vadd.f32 %v443, 1e-05
  %v445 = vrsqrt.pop %v444
  %v446 = vmul.f32 %v445, %v444
  %v447 = vmul.f32 %v446, %v445
  %v448 = vmul.f32 0.5, %v447
  %v449 = vsub.f32 1.5, %v448
  %v450 = vmul.f32 %v445, %v449
  %vm451 = vweird.f32 %v444
  %vm452 = vweird.f32 %v445
  %vm453 = vmor %vm451, %vm452
  %v454 = vsel %vm453, %v445, %v450
  %v455 = vmul.f32 %v438, %v454
  %v456 = vperm.slane %v31, 0
  %v457 = vmul.f32 %v455, %v456
  %v458 = vperm.slane %v31, 1
  %v459 = vadd.f32 %v457, %v458
  %v460 = vpack.c.bf16 %v459, %v459
  %v461 = vld [vmem:[%s6] sm:$0xf]
  %v462 = vld [vmem:[%s6 + $0x4] sm:$0xf]
  %v463 = vld [vmem:[%s6 + $0x8] sm:$0xf]
  %v464 = vld [vmem:[%s6 + $0xc] sm:$0xf]
  %v465 = vperm.slane %v31, 2
  %v470 = vunpack.c.l.b16 %v461
  %v471 = vunpack.c.l.b16 %v462
  %v472 = vunpack.c.l.b16 %v463
  %v473 = vunpack.c.l.b16 %v464
  %v474 = vpack.c.b16 %v471, %v470
  %v475 = vpack.c.b16 %v473, %v472
  %v479 = vsel %vm127, %v460, 0
  %481 = vmatpush.bf16.msra.mxu0 0
  %482 = vmatpush.bf16.msra.mxu0 0
  %483 = vmatpush.bf16.msra.mxu0 0
  %484 = vmatpush.bf16.msra.mxu0 0
  %485 = vmatpush.bf16.msra.mxu0 0
  %486 = vmatpush.bf16.msra.mxu0 0
  %487 = vmatpush.bf16.msra.mxu0 %v475
  %488 = vmatpush.bf16.msra.mxu0 %v474
  %489 = vmatmul.bf16.gmra.mxu0 %v479
  %v490 = vpop.f32.mrf.mxu0
  %v491 = vadd.f32 %v465, %v490
  %v492 = vpop.f32.mrf.mxu0
  %493 = vdwg.mxu0
  %vm494 = vcmask 1024
  %495 = vst.msk [vmem:[%s8] sm:$0x3] %vm494, %v491
  // Predicated region
  $region34: #{molformer_with_regression_head.1} parent=0 // pred_check
    _
  $region35: #{molformer_with_regression_head.1} parent=0 // pred_check_branch
    %497 = sbr.rel (0) target = $region37
  $region36: #{molformer_with_regression_head.1} parent=0 // pred_region
    _
  $region37: #{molformer_with_regression_head.1} parent=0 // pred_fallthru
    _
  // Predicated region
  $region38: #{molformer_with_regression_head.1} parent=0 // pred_check
    _
  $region39: #{molformer_with_regression_head.1} parent=0 // pred_check_branch
    %499 = sbr.rel (0) target = $region41
  $region40: #{molformer_with_regression_head.1} parent=0 // pred_region
    _
  $region41: #{molformer_with_regression_head.1} parent=0 // pred_fallthru
    _

</llo_original>
